<compile_context>
chip_gen: v5e
topology: v5e:2x2
jax: 0.10.0
libtpu: 0.0.40
codegen_flags: <defaults>
</compile_context>

<pallas_src>
import functools

import jax
import jax.numpy as jnp
from jax.experimental import pallas as pl
from jax.experimental.pallas import tpu as pltpu


def _round_up(x, m):
    return ((x + m - 1) // m) * m


def _mlp_kernel(*refs, num_layers, compute_dtype):
    """Fused MLP kernel.

    refs = (x_ref, w1_ref, b1_ref, ..., wL_ref, bL_ref, o_ref)
    ReLU after every layer except the last (matches the nn.Sequential layout).
    MXU operands are fed in `compute_dtype` (bf16 by default); accumulation is f32.
    """
    x_ref = refs[0]
    o_ref = refs[-1]
    param_refs = refs[1:-1]

    h = x_ref[...].astype(compute_dtype)
    for i in range(num_layers):
        w = param_refs[2 * i][...].astype(compute_dtype)
        b = param_refs[2 * i + 1][...].astype(jnp.float32)
        acc = jnp.dot(h, w, preferred_element_type=jnp.float32) + b  # MXU, f32 accumulate
        if i < num_layers - 1:
            acc = jnp.maximum(acc, 0.0)          # ReLU in f32 on the VPU (safe on v5e too)
            h = acc.astype(compute_dtype)        # narrow inter-layer activation -> fewer vregs/spills
        else:
            o_ref[...] = acc.astype(o_ref.dtype)


def dynamic_embedding_transformer(x, params, *, batch_tile=256,
                                  compute_dtype=jnp.bfloat16):
    """Run the fused MLP Pallas kernel.

    Args:
      x: (B, input_dim) array.
      params: list of (w, b) pairs; w is (in, out), b is (1, out).
      batch_tile: max rows per grid step (multiple of 8; 256-512 recommended for big B).
      compute_dtype: MXU operand dtype (bf16 default; f32 for bit-accurate path).
    Returns:
      (B, output_dim) array, same dtype as x.
    """
    B, in_dim = x.shape
    out_dim = params[-1][0].shape[1]
    num_layers = len(params)

    # ---- batch tile selection ----------------------------------------------------
    bt = max(8, _round_up(min(batch_tile, _round_up(B, 8)), 8))
    # Keep >= 2 grid steps when possible so a 2-TensorCore chip (v7x) shards the batch.
    if B > 8 and pl.cdiv(B, bt) < 2:
        bt = max(8, _round_up(pl.cdiv(B, 2), 8))
    grid = (pl.cdiv(B, bt),)

    # ---- VMEM budget + cost estimate ---------------------------------------------
    x_item = jnp.dtype(x.dtype).itemsize
    c_item = jnp.dtype(compute_dtype).itemsize
    param_bytes = sum(int(w.size) * w.dtype.itemsize + int(b.size) * b.dtype.itemsize
                      for w, b in params)
    io_bytes = 2 * bt * in_dim * x_item + 2 * bt * out_dim * x_item   # double-buffered tiles
    max_width = max([in_dim] + [w.shape[1] for w, _ in params])
    act_bytes = bt * max_width * (c_item + 4)                         # bf16 h + f32 accumulator
    # x2 on params in case single-buffering is unavailable on this Pallas version.
    need = 2 * param_bytes + io_bytes + act_bytes
    vmem_limit = int(min(max(need * 5 // 4, 32 * 1024 * 1024), 64 * 1024 * 1024))
    # TODO(synk): for very large hidden_dim (weights >> 64 MiB on v7x) add a K/N weight-tiling
    # grid axis with an f32 accumulator instead of loading each weight whole.

    flops = 0
    k = in_dim
    for w, _ in params:
        flops += 2 * B * k * int(w.shape[1])
        k = int(w.shape[1])
    bytes_accessed = int(x.size) * x_item + param_bytes + B * out_dim * x_item
    cost = pl.CostEstimate(flops=flops, transcendentals=0,
                           bytes_accessed=int(bytes_accessed))

    flat_params = []
    for w, b in params:
        flat_params.extend([w, b])

    kernel = functools.partial(_mlp_kernel, num_layers=num_layers,
                               compute_dtype=compute_dtype)

    def _build(single_buffer_weights):
        in_specs = [pl.BlockSpec((bt, in_dim), lambda i: (i, 0))]
        for w, b in params:
            if single_buffer_weights:
                # Constant block index across the grid -> resident; single buffer halves VMEM.
                in_specs.append(pl.BlockSpec(w.shape, lambda i: (0, 0),
                                             pipeline_mode=pl.Buffered(1)))
                in_specs.append(pl.BlockSpec(b.shape, lambda i: (0, 0),
                                             pipeline_mode=pl.Buffered(1)))
            else:
                in_specs.append(pl.BlockSpec(w.shape, lambda i: (0, 0)))
                in_specs.append(pl.BlockSpec(b.shape, lambda i: (0, 0)))
        out_spec = pl.BlockSpec((bt, out_dim), lambda i: (i, 0))

        return pl.pallas_call(
            kernel,
            out_shape=jax.ShapeDtypeStruct((B, out_dim), x.dtype),
            grid_spec=pltpu.PrefetchScalarGridSpec(
                num_scalar_prefetch=0,
                grid=grid,
                in_specs=in_specs,
                out_specs=out_spec,
            ),
            compiler_params=pltpu.CompilerParams(
                dimension_semantics=("parallel",),
                vmem_limit_bytes=vmem_limit,
            ),
            cost_estimate=cost,
        )

    try:
        return _build(True)(x, *flat_params)
    except Exception:
        # Fall back to default double-buffered weight specs if Buffered(1) is rejected.
        return _build(False)(x, *flat_params)


def init_params(key, input_dim, hidden_dim, output_dim, num_hidden_layers):
    """Deterministic init mirroring nn.Linear's U(-1/sqrt(fan_in), 1/sqrt(fan_in))."""
    if num_hidden_layers < 1:
        raise ValueError("num_hidden_layers must be at least 1")
    dims = [input_dim] + [hidden_dim] * num_hidden_layers + [output_dim]
    params = []
    for i in range(len(dims) - 1):
        fan_in, fan_out = dims[i], dims[i + 1]
        key, kw, kb = jax.random.split(key, 3)
        bound = 1.0 / (fan_in ** 0.5)
        w = jax.random.uniform(kw, (fan_in, fan_out), jnp.float32, -bound, bound)
        b = jax.random.uniform(kb, (1, fan_out), jnp.float32, -bound, bound)
        params.append((w, b))
    return params


def reference_forward(x, params):
    h = x.astype(jnp.float32)
    for i, (w, b) in enumerate(params):
        h = h @ w + b
        if i < len(params) - 1:
            h = jnp.maximum(h, 0.0)
    return h.astype(x.dtype)


if __name__ == "__main__":
    # Shapes consistent with the module (input_dim=128, hidden_dim=128, output_dim=256,
    # num_hidden_layers=2 -> 3 Linear layers total).
    B, INPUT_DIM, HIDDEN_DIM, OUTPUT_DIM = 16, 128, 128, 256
    NUM_HIDDEN_LAYERS = 2

    key = jax.random.PRNGKey(0)
    key, kx = jax.random.split(key)
    x = jax.random.normal(kx, (B, INPUT_DIM), jnp.float32)
    params = init_params(key, INPUT_DIM, HIDDEN_DIM, OUTPUT_DIM, NUM_HIDDEN_LAYERS)

    ref = reference_forward(x, params)

    # Exact f32 path (bit-of-a-sanity check against the reference).
    out_f32 = jax.block_until_ready(
        dynamic_embedding_transformer(x, params, compute_dtype=jnp.float32))
    assert out_f32.shape == (B, OUTPUT_DIM)
    assert jnp.allclose(out_f32, ref, atol=1e-4, rtol=1e-4), "f32 path mismatch vs reference"

    # Default fast path: bf16 MXU operands, f32 accumulation.
    out_bf16 = jax.block_until_ready(dynamic_embedding_transformer(x, params))
    assert out_bf16.shape == (B, OUTPUT_DIM)
    assert jnp.allclose(out_bf16, ref, atol=5e-2, rtol=5e-2), "bf16 path mismatch vs reference"

    print("KERNEL_OK")
</pallas_src>

<mosaic_0001>
module attributes {stable_mosaic.version = 11 : i64} {
  func.func @_mlp_kernel(%arg0: i32, %arg1: memref<8x128xf32, #tpu.memory_space<vmem>>, %arg2: memref<128x128xf32, #tpu.memory_space<vmem>>, %arg3: memref<1x128xf32, #tpu.memory_space<vmem>>, %arg4: memref<128x128xf32, #tpu.memory_space<vmem>>, %arg5: memref<1x128xf32, #tpu.memory_space<vmem>>, %arg6: memref<128x256xf32, #tpu.memory_space<vmem>>, %arg7: memref<1x256xf32, #tpu.memory_space<vmem>>, %arg8: memref<8x256xf32, #tpu.memory_space<vmem>>) attributes {dimension_semantics = [#tpu.dimension_semantics<parallel>], iteration_bounds = array<i64: 2>, scalar_prefetch = 0 : i64, scratch_operands = 0 : i64, tpu.core_type = #tpu.core_type<tc>, window_params = [{transform_indices = @transform_0, window_bounds = array<i64: 8, 128>}, {pipeline_mode = #tpu.pipeline_mode<synchronous>, transform_indices = @transform_1, window_bounds = array<i64: 128, 128>}, {pipeline_mode = #tpu.pipeline_mode<synchronous>, transform_indices = @transform_2, window_bounds = array<i64: 1, 128>}, {pipeline_mode = #tpu.pipeline_mode<synchronous>, transform_indices = @transform_3, window_bounds = array<i64: 128, 128>}, {pipeline_mode = #tpu.pipeline_mode<synchronous>, transform_indices = @transform_4, window_bounds = array<i64: 1, 128>}, {pipeline_mode = #tpu.pipeline_mode<synchronous>, transform_indices = @transform_5, window_bounds = array<i64: 128, 256>}, {pipeline_mode = #tpu.pipeline_mode<synchronous>, transform_indices = @transform_6, window_bounds = array<i64: 1, 256>}, {transform_indices = @transform_7, window_bounds = array<i64: 8, 256>}]} {
    %c0 = arith.constant 0 : index
    %c0_0 = arith.constant 0 : index
    %0 = vector.load %arg1[%c0, %c0_0] : memref<8x128xf32, #tpu.memory_space<vmem>>, vector<8x128xf32>
    %c0_1 = arith.constant 0 : index
    %c0_2 = arith.constant 0 : index
    %1 = vector.load %arg2[%c0_1, %c0_2] : memref<128x128xf32, #tpu.memory_space<vmem>>, vector<128x128xf32>
    %c0_3 = arith.constant 0 : index
    %c0_4 = arith.constant 0 : index
    %2 = vector.load %arg3[%c0_3, %c0_4] : memref<1x128xf32, #tpu.memory_space<vmem>>, vector<1x128xf32>
    %cst = arith.constant dense<0.000000e+00> : vector<8x128xf32>
    %3 = tpu.matmul %0, %1, %cst {dimension_numbers = #tpu.dot_dimension_numbers<[1], [0], [0], [1], [0, 0, 1, 1], [], []>} : vector<8x128xf32>, vector<128x128xf32>, vector<8x128xf32> -> vector<8x128xf32>
    %4 = vector.broadcast %2 : vector<1x128xf32> to vector<8x128xf32>
    %5 = arith.addf %3, %4 : vector<8x128xf32>
    %cst_5 = arith.constant 0.000000e+00 : f32
    %6 = vector.broadcast %cst_5 : f32 to vector<8x128xf32>
    %7 = arith.maximumf %5, %6 : vector<8x128xf32>
    %c0_6 = arith.constant 0 : index
    %c0_7 = arith.constant 0 : index
    %8 = vector.load %arg4[%c0_6, %c0_7] : memref<128x128xf32, #tpu.memory_space<vmem>>, vector<128x128xf32>
    %c0_8 = arith.constant 0 : index
    %c0_9 = arith.constant 0 : index
    %9 = vector.load %arg5[%c0_8, %c0_9] : memref<1x128xf32, #tpu.memory_space<vmem>>, vector<1x128xf32>
    %cst_10 = arith.constant dense<0.000000e+00> : vector<8x128xf32>
    %10 = tpu.matmul %7, %8, %cst_10 {dimension_numbers = #tpu.dot_dimension_numbers<[1], [0], [0], [1], [0, 0, 1, 1], [], []>} : vector<8x128xf32>, vector<128x128xf32>, vector<8x128xf32> -> vector<8x128xf32>
    %11 = vector.broadcast %9 : vector<1x128xf32> to vector<8x128xf32>
    %12 = arith.addf %10, %11 : vector<8x128xf32>
    %cst_11 = arith.constant 0.000000e+00 : f32
    %13 = vector.broadcast %cst_11 : f32 to vector<8x128xf32>
    %14 = arith.maximumf %12, %13 : vector<8x128xf32>
    %c0_12 = arith.constant 0 : index
    %c0_13 = arith.constant 0 : index
    %15 = vector.load %arg6[%c0_12, %c0_13] : memref<128x256xf32, #tpu.memory_space<vmem>>, vector<128x256xf32>
    %c0_14 = arith.constant 0 : index
    %c0_15 = arith.constant 0 : index
    %16 = vector.load %arg7[%c0_14, %c0_15] : memref<1x256xf32, #tpu.memory_space<vmem>>, vector<1x256xf32>
    %cst_16 = arith.constant dense<0.000000e+00> : vector<8x256xf32>
    %17 = tpu.matmul %14, %15, %cst_16 {dimension_numbers = #tpu.dot_dimension_numbers<[1], [0], [0], [1], [0, 0, 1, 1], [], []>} : vector<8x128xf32>, vector<128x256xf32>, vector<8x256xf32> -> vector<8x256xf32>
    %18 = vector.broadcast %16 : vector<1x256xf32> to vector<8x256xf32>
    %19 = arith.addf %17, %18 : vector<8x256xf32>
    %c0_17 = arith.constant 0 : index
    %c0_18 = arith.constant 0 : index
    %20 = vector.load %arg8[%c0_17, %c0_18] : memref<8x256xf32, #tpu.memory_space<vmem>>, vector<8x256xf32>
    tpu.vector_store %arg8[%c0_17, %c0_18], %19 {strides = array<i32>} : memref<8x256xf32, #tpu.memory_space<vmem>>, vector<8x256xf32>,
    return
  }
  func.func @transform_0(%arg0: i32) -> (i32, i32) {
    %c0_i32 = arith.constant 0 : i32
    %c0_i32_0 = arith.constant 0 : i32
    return %arg0, %c0_i32 : i32, i32
  }
  func.func @transform_1(%arg0: i32) -> (i32, i32) {
    %c0_i32 = arith.constant 0 : i32
    %c0_i32_0 = arith.constant 0 : i32
    %c0_i32_1 = arith.constant 0 : i32
    return %c0_i32, %c0_i32_0 : i32, i32
  }
  func.func @transform_2(%arg0: i32) -> (i32, i32) {
    %c0_i32 = arith.constant 0 : i32
    %c0_i32_0 = arith.constant 0 : i32
    %c0_i32_1 = arith.constant 0 : i32
    return %c0_i32, %c0_i32_0 : i32, i32
  }
  func.func @transform_3(%arg0: i32) -> (i32, i32) {
    %c0_i32 = arith.constant 0 : i32
    %c0_i32_0 = arith.constant 0 : i32
    %c0_i32_1 = arith.constant 0 : i32
    return %c0_i32, %c0_i32_0 : i32, i32
  }
  func.func @transform_4(%arg0: i32) -> (i32, i32) {
    %c0_i32 = arith.constant 0 : i32
    %c0_i32_0 = arith.constant 0 : i32
    %c0_i32_1 = arith.constant 0 : i32
    return %c0_i32, %c0_i32_0 : i32, i32
  }
  func.func @transform_5(%arg0: i32) -> (i32, i32) {
    %c0_i32 = arith.constant 0 : i32
    %c0_i32_0 = arith.constant 0 : i32
    %c0_i32_1 = arith.constant 0 : i32
    return %c0_i32, %c0_i32_0 : i32, i32
  }
  func.func @transform_6(%arg0: i32) -> (i32, i32) {
    %c0_i32 = arith.constant 0 : i32
    %c0_i32_0 = arith.constant 0 : i32
    %c0_i32_1 = arith.constant 0 : i32
    return %c0_i32, %c0_i32_0 : i32, i32
  }
  func.func @transform_7(%arg0: i32) -> (i32, i32) {
    %c0_i32 = arith.constant 0 : i32
    %c0_i32_0 = arith.constant 0 : i32
    return %arg0, %c0_i32 : i32, i32
  }
}

module attributes {stable_mosaic.version = 11 : i64} {
  func.func @_mlp_kernel(%arg0: i32, %arg1: memref<8x128xf32, #tpu.memory_space<vmem>>, %arg2: memref<128x128xf32, #tpu.memory_space<vmem>>, %arg3: memref<1x128xf32, #tpu.memory_space<vmem>>, %arg4: memref<128x128xf32, #tpu.memory_space<vmem>>, %arg5: memref<1x128xf32, #tpu.memory_space<vmem>>, %arg6: memref<128x256xf32, #tpu.memory_space<vmem>>, %arg7: memref<1x256xf32, #tpu.memory_space<vmem>>, %arg8: memref<8x256xf32, #tpu.memory_space<vmem>>) attributes {dimension_semantics = [#tpu.dimension_semantics<parallel>], iteration_bounds = array<i64: 2>, scalar_prefetch = 0 : i64, scratch_operands = 0 : i64, tpu.core_type = #tpu.core_type<tc>, window_params = [{transform_indices = @transform_0, window_bounds = array<i64: 8, 128>}, {pipeline_mode = #tpu.pipeline_mode<synchronous>, transform_indices = @transform_1, window_bounds = array<i64: 128, 128>}, {pipeline_mode = #tpu.pipeline_mode<synchronous>, transform_indices = @transform_2, window_bounds = array<i64: 1, 128>}, {pipeline_mode = #tpu.pipeline_mode<synchronous>, transform_indices = @transform_3, window_bounds = array<i64: 128, 128>}, {pipeline_mode = #tpu.pipeline_mode<synchronous>, transform_indices = @transform_4, window_bounds = array<i64: 1, 128>}, {pipeline_mode = #tpu.pipeline_mode<synchronous>, transform_indices = @transform_5, window_bounds = array<i64: 128, 256>}, {pipeline_mode = #tpu.pipeline_mode<synchronous>, transform_indices = @transform_6, window_bounds = array<i64: 1, 256>}, {transform_indices = @transform_7, window_bounds = array<i64: 8, 256>}]} {
    %c0 = arith.constant 0 : index
    %c0_0 = arith.constant 0 : index
    %0 = vector.load %arg1[%c0, %c0_0] : memref<8x128xf32, #tpu.memory_space<vmem>>, vector<8x128xf32>
    %c0_1 = arith.constant 0 : index
    %c0_2 = arith.constant 0 : index
    %1 = vector.load %arg2[%c0_1, %c0_2] : memref<128x128xf32, #tpu.memory_space<vmem>>, vector<128x128xf32>
    %c0_3 = arith.constant 0 : index
    %c0_4 = arith.constant 0 : index
    %2 = vector.load %arg3[%c0_3, %c0_4] : memref<1x128xf32, #tpu.memory_space<vmem>>, vector<1x128xf32>
    %cst = arith.constant dense<0.000000e+00> : vector<8x128xf32>
    %3 = tpu.matmul %0, %1, %cst {dimension_numbers = #tpu.dot_dimension_numbers<[1], [0], [0], [1], [0, 0, 1, 1], [], []>} : vector<8x128xf32>, vector<128x128xf32>, vector<8x128xf32> -> vector<8x128xf32>
    %4 = vector.broadcast %2 : vector<1x128xf32> to vector<8x128xf32>
    %5 = arith.addf %3, %4 : vector<8x128xf32>
    %cst_5 = arith.constant 0.000000e+00 : f32
    %6 = vector.broadcast %cst_5 : f32 to vector<8x128xf32>
    %7 = arith.maximumf %5, %6 : vector<8x128xf32>
    %c0_6 = arith.constant 0 : index
    %c0_7 = arith.constant 0 : index
    %8 = vector.load %arg4[%c0_6, %c0_7] : memref<128x128xf32, #tpu.memory_space<vmem>>, vector<128x128xf32>
    %c0_8 = arith.constant 0 : index
    %c0_9 = arith.constant 0 : index
    %9 = vector.load %arg5[%c0_8, %c0_9] : memref<1x128xf32, #tpu.memory_space<vmem>>, vector<1x128xf32>
    %cst_10 = arith.constant dense<0.000000e+00> : vector<8x128xf32>
    %10 = tpu.matmul %7, %8, %cst_10 {dimension_numbers = #tpu.dot_dimension_numbers<[1], [0], [0], [1], [0, 0, 1, 1], [], []>} : vector<8x128xf32>, vector<128x128xf32>, vector<8x128xf32> -> vector<8x128xf32>
    %11 = vector.broadcast %9 : vector<1x128xf32> to vector<8x128xf32>
    %12 = arith.addf %10, %11 : vector<8x128xf32>
    %cst_11 = arith.constant 0.000000e+00 : f32
    %13 = vector.broadcast %cst_11 : f32 to vector<8x128xf32>
    %14 = arith.maximumf %12, %13 : vector<8x128xf32>
    %c0_12 = arith.constant 0 : index
    %c0_13 = arith.constant 0 : index
    %15 = vector.load %arg6[%c0_12, %c0_13] : memref<128x256xf32, #tpu.memory_space<vmem>>, vector<128x256xf32>
    %c0_14 = arith.constant 0 : index
    %c0_15 = arith.constant 0 : index
    %16 = vector.load %arg7[%c0_14, %c0_15] : memref<1x256xf32, #tpu.memory_space<vmem>>, vector<1x256xf32>
    %cst_16 = arith.constant dense<0.000000e+00> : vector<8x256xf32>
    %17 = tpu.matmul %14, %15, %cst_16 {dimension_numbers = #tpu.dot_dimension_numbers<[1], [0], [0], [1], [0, 0, 1, 1], [], []>} : vector<8x128xf32>, vector<128x256xf32>, vector<8x256xf32> -> vector<8x256xf32>
    %18 = vector.broadcast %16 : vector<1x256xf32> to vector<8x256xf32>
    %19 = arith.addf %17, %18 : vector<8x256xf32>
    %c0_17 = arith.constant 0 : index
    %c0_18 = arith.constant 0 : index
    %20 = vector.load %arg8[%c0_17, %c0_18] : memref<8x256xf32, #tpu.memory_space<vmem>>, vector<8x256xf32>
    tpu.vector_store %arg8[%c0_17, %c0_18], %19 {strides = array<i32>} : memref<8x256xf32, #tpu.memory_space<vmem>>, vector<8x256xf32>,
    return
  }
  func.func @transform_0(%arg0: i32) -> (i32, i32) {
    %c0_i32 = arith.constant 0 : i32
    %c0_i32_0 = arith.constant 0 : i32
    return %arg0, %c0_i32 : i32, i32
  }
  func.func @transform_1(%arg0: i32) -> (i32, i32) {
    %c0_i32 = arith.constant 0 : i32
    %c0_i32_0 = arith.constant 0 : i32
    %c0_i32_1 = arith.constant 0 : i32
    return %c0_i32, %c0_i32_0 : i32, i32
  }
  func.func @transform_2(%arg0: i32) -> (i32, i32) {
    %c0_i32 = arith.constant 0 : i32
    %c0_i32_0 = arith.constant 0 : i32
    %c0_i32_1 = arith.constant 0 : i32
    return %c0_i32, %c0_i32_0 : i32, i32
  }
  func.func @transform_3(%arg0: i32) -> (i32, i32) {
    %c0_i32 = arith.constant 0 : i32
    %c0_i32_0 = arith.constant 0 : i32
    %c0_i32_1 = arith.constant 0 : i32
    return %c0_i32, %c0_i32_0 : i32, i32
  }
  func.func @transform_4(%arg0: i32) -> (i32, i32) {
    %c0_i32 = arith.constant 0 : i32
    %c0_i32_0 = arith.constant 0 : i32
    %c0_i32_1 = arith.constant 0 : i32
    return %c0_i32, %c0_i32_0 : i32, i32
  }
  func.func @transform_5(%arg0: i32) -> (i32, i32) {
    %c0_i32 = arith.constant 0 : i32
    %c0_i32_0 = arith.constant 0 : i32
    %c0_i32_1 = arith.constant 0 : i32
    return %c0_i32, %c0_i32_0 : i32, i32
  }
  func.func @transform_6(%arg0: i32) -> (i32, i32) {
    %c0_i32 = arith.constant 0 : i32
    %c0_i32_0 = arith.constant 0 : i32
    %c0_i32_1 = arith.constant 0 : i32
    return %c0_i32, %c0_i32_0 : i32, i32
  }
  func.func @transform_7(%arg0: i32) -> (i32, i32) {
    %c0_i32 = arith.constant 0 : i32
    %c0_i32_0 = arith.constant 0 : i32
    return %arg0, %c0_i32 : i32, i32
  }
}

</mosaic_0001>

<llo_original>
// kernel: tpu_custom_call.1
$region0: #{tpu_custom_call.1}
  #allocation0 [shape = 'u32[]', space=smem, size = 0x4, offset = 0x4, fixed_abs, tag = 'smem constant byte address 0x4 - core index']
  #allocation1 [shape = 'u32[72,128]{1,0:T(1,128)}', space=vmem, size = 0x9000, scoped, tag = 'internal scratch']
  %s0 = inlined_call_operand.hbm [shape: f32[16,128], index: 0, kind: input, shape index: {}]
  %s1 = inlined_call_operand.hbm [shape: f32[128,128], index: 1, kind: input, shape index: {}]
  %s2 = inlined_call_operand.vmem [shape: f32[1,128], index: 2, kind: input, shape index: {}]
  %s3 = inlined_call_operand.hbm [shape: f32[128,128], index: 3, kind: input, shape index: {}]
  %s4 = inlined_call_operand.hbm [shape: f32[1,128], index: 4, kind: input, shape index: {}]
  %s5 = inlined_call_operand.hbm [shape: f32[128,256], index: 5, kind: input, shape index: {}]
  %s6 = inlined_call_operand.vmem [shape: f32[1,256], index: 6, kind: input, shape index: {}]
  %s7 = inlined_call_operand.hbm [shape: f32[16,256], index: 7, kind: output, shape index: {}]
  %s8 = sld [smem:[#allocation0]]
  $region81: #{tpu_custom_call.1} parent=0
    _
  %s10 = ssub.s32 1, %s8
  %s11 = scalar_select 0, %s10, %s8
  $region1: #{tpu_custom_call.1} parent=0
    #allocation2 [shape = 'u8[8192]{0}', space=vmem, size = 0x2000, scoped, tag = 'input window, operand 0']
    #allocation3 [shape = 's32[2]{0}', space=sflag, size = 0x8, scoped, tag = 'scoped memory for tpu_custom_call.1']
    #allocation4 [shape = 's32[2]{0}', space=sflag, size = 0x8, scoped, tag = 'scoped memory for tpu_custom_call.1']
    #allocation5 [shape = 'u8[65536]{0}', space=vmem, size = 0x10000, scoped, tag = 'input window, operand 1, single buffered']
    #allocation6 [shape = 's32[1]{0}', space=sflag, size = 0x4, scoped, tag = 'scoped memory for tpu_custom_call.1']
    #allocation7 [shape = 'u8[65536]{0}', space=vmem, size = 0x10000, scoped, tag = 'input window, operand 3, single buffered']
    #allocation8 [shape = 'u8[512]{0}', space=vmem, size = 0x400, scoped, tag = 'input window, operand 4, single buffered']
    #allocation9 [shape = 's32[1]{0}', space=sflag, size = 0x4, scoped, tag = 'scoped memory for tpu_custom_call.1']
    #allocation10 [shape = 'u8[131072]{0}', space=vmem, size = 0x20000, scoped, tag = 'input window, operand 5, single buffered']
    #allocation11 [shape = 'u8[16384]{0}', space=vmem, size = 0x4000, scoped, tag = 'output window, operand 0']
    %12 = vsyncpa [#allocation3], 0
    %s13 = scalar_lea.sflag [#allocation3], 1
    %14 = vsyncpa %s13, 0
    %15 = vsyncpa [#allocation6], 0
    %16 = vsyncpa [#allocation9], 0
    %17 = vsyncpa [#allocation4], 0
    %s18 = scalar_lea.sflag [#allocation4], 1
    %19 = vsyncpa %s18, 0
    loop: start=0, step=1, limit=4
    $region2: #{tpu_custom_call.1} parent=1 // loop_pre_header
      _
    $region3: #{tpu_custom_call.1} parent=1 // loop_header
      %s21 = sphi 0, %s25
      %p22 = scmp.ge.s32.totalorder %s21, 4
      %s31 = sphi 0, %s33
      %s34 = sphi 0, %s31
      %s35 = sphi 0, %s34
      %s51 = sphi 0, %s35
      %s55 = sphi 0, %s55
      %s57 = sphi 0, %s55
      %s58 = sphi 0, %s57
      %s72 = sphi 0, %s58
      %s76 = sphi 0, %s76
      %s78 = sphi 0, %s76
      %s79 = sphi 0, %s78
      %s93 = sphi 0, %s79
      %s97 = sphi 0, %s97
      %s99 = sphi 0, %s97
      %s100 = sphi 0, %s99
      %s114 = sphi 0, %s100
      %s118 = sphi 0, %s118
      %s120 = sphi 0, %s118
      %s121 = sphi 0, %s120
      %s135 = sphi 0, %s121
      %s139 = sphi 0, %s139
      %s141 = sphi 0, %s139
      %s142 = sphi 0, %s141
      %s156 = sphi 0, %s142
      %s160 = sphi 0, %s160
      %s162 = sphi 0, %s160
      %s163 = sphi 0, %s162
      %s177 = sphi 0, %s163
      %s183 = sphi 0, %s185
      %s186 = sphi 0, %s183
      %s187 = sphi 0, %s186
      %s203 = sphi 0, %s187
    $region4: #{tpu_custom_call.1} parent=1 // loop_header_branch
      %24 = sbr.rel (%p22) target = $region8
    $region5: #{tpu_custom_call.1} parent=1 // loop_body
      %s26 = ssub.s32 %s21, 1
      %s27 = ssub.s32 %s21, 2
      %s28 = sadd.s32 %s21, 1
      %s29 = ssub.s32 %s21, %s28
      %p30 = scmp.eq.s32.totalorder %s29, 0
      %s32 = sadd.s32 %s31, 1
      %s33 = scalar_select %p30, %s31, %s32
      %p36 = pneg %p30
      %p37 = scmp.eq.s32.totalorder %s21, 1
      %p38 = por %p36, %p37
      %p39 = scmp.ne.s32.totalorder %s31, %s34
      %p40 = scmp.eq.s32.totalorder %s21, 0
      %p41 = por %p39, %p40
      %p42 = scmp.ne.s32.totalorder %s31, %s34
      %p43 = scmp.eq.s32.totalorder %s26, 1
      %p44 = por %p42, %p43
      %p45 = scmp.ne.s32.totalorder %s34, %s35
      %p46 = scmp.eq.s32.totalorder %s26, 0
      %p47 = por %p45, %p46
      %p48 = scmp.ne.s32.totalorder %s34, %s35
      %p49 = scmp.eq.s32.totalorder %s27, 1
      %p50 = por %p48, %p49
      %p52 = scmp.ne.s32.totalorder %s35, %s51
      %p53 = scmp.eq.s32.totalorder %s27, 0
      %p54 = por %p52, %p53
      %s56 = sadd.s32 %s55, 1
      %p59 = scmp.eq.s32.totalorder %s21, 1
      %p60 = scmp.ne.s32.totalorder %s55, %s57
      %p61 = scmp.eq.s32.totalorder %s21, 0
      %p62 = por %p60, %p61
      %p63 = scmp.ne.s32.totalorder %s55, %s57
      %p64 = scmp.eq.s32.totalorder %s26, 1
      %p65 = por %p63, %p64
      %p66 = scmp.ne.s32.totalorder %s57, %s58
      %p67 = scmp.eq.s32.totalorder %s26, 0
      %p68 = por %p66, %p67
      %p69 = scmp.ne.s32.totalorder %s57, %s58
      %p70 = scmp.eq.s32.totalorder %s27, 1
      %p71 = por %p69, %p70
      %p73 = scmp.ne.s32.totalorder %s58, %s72
      %p74 = scmp.eq.s32.totalorder %s27, 0
      %p75 = por %p73, %p74
      %s77 = sadd.s32 %s76, 1
      %p80 = scmp.eq.s32.totalorder %s21, 1
      %p81 = scmp.ne.s32.totalorder %s76, %s78
      %p82 = scmp.eq.s32.totalorder %s21, 0
      %p83 = por %p81, %p82
      %p84 = scmp.ne.s32.totalorder %s76, %s78
      %p85 = scmp.eq.s32.totalorder %s26, 1
      %p86 = por %p84, %p85
      %p87 = scmp.ne.s32.totalorder %s78, %s79
      %p88 = scmp.eq.s32.totalorder %s26, 0
      %p89 = por %p87, %p88
      %p90 = scmp.ne.s32.totalorder %s78, %s79
      %p91 = scmp.eq.s32.totalorder %s27, 1
      %p92 = por %p90, %p91
      %p94 = scmp.ne.s32.totalorder %s79, %s93
      %p95 = scmp.eq.s32.totalorder %s27, 0
      %p96 = por %p94, %p95
      %s98 = sadd.s32 %s97, 1
      %p101 = scmp.eq.s32.totalorder %s21, 1
      %p102 = scmp.ne.s32.totalorder %s97, %s99
      %p103 = scmp.eq.s32.totalorder %s21, 0
      %p104 = por %p102, %p103
      %p105 = scmp.ne.s32.totalorder %s97, %s99
      %p106 = scmp.eq.s32.totalorder %s26, 1
      %p107 = por %p105, %p106
      %p108 = scmp.ne.s32.totalorder %s99, %s100
      %p109 = scmp.eq.s32.totalorder %s26, 0
      %p110 = por %p108, %p109
      %p111 = scmp.ne.s32.totalorder %s99, %s100
      %p112 = scmp.eq.s32.totalorder %s27, 1
      %p113 = por %p111, %p112
      %p115 = scmp.ne.s32.totalorder %s100, %s114
      %p116 = scmp.eq.s32.totalorder %s27, 0
      %p117 = por %p115, %p116
      %s119 = sadd.s32 %s118, 1
      %p122 = scmp.eq.s32.totalorder %s21, 1
      %p123 = scmp.ne.s32.totalorder %s118, %s120
      %p124 = scmp.eq.s32.totalorder %s21, 0
      %p125 = por %p123, %p124
      %p126 = scmp.ne.s32.totalorder %s118, %s120
      %p127 = scmp.eq.s32.totalorder %s26, 1
      %p128 = por %p126, %p127
      %p129 = scmp.ne.s32.totalorder %s120, %s121
      %p130 = scmp.eq.s32.totalorder %s26, 0
      %p131 = por %p129, %p130
      %p132 = scmp.ne.s32.totalorder %s120, %s121
      %p133 = scmp.eq.s32.totalorder %s27, 1
      %p134 = por %p132, %p133
      %p136 = scmp.ne.s32.totalorder %s121, %s135
      %p137 = scmp.eq.s32.totalorder %s27, 0
      %p138 = por %p136, %p137
      %s140 = sadd.s32 %s139, 1
      %p143 = scmp.eq.s32.totalorder %s21, 1
      %p144 = scmp.ne.s32.totalorder %s139, %s141
      %p145 = scmp.eq.s32.totalorder %s21, 0
      %p146 = por %p144, %p145
      %p147 = scmp.ne.s32.totalorder %s139, %s141
      %p148 = scmp.eq.s32.totalorder %s26, 1
      %p149 = por %p147, %p148
      %p150 = scmp.ne.s32.totalorder %s141, %s142
      %p151 = scmp.eq.s32.totalorder %s26, 0
      %p152 = por %p150, %p151
      %p153 = scmp.ne.s32.totalorder %s141, %s142
      %p154 = scmp.eq.s32.totalorder %s27, 1
      %p155 = por %p153, %p154
      %p157 = scmp.ne.s32.totalorder %s142, %s156
      %p158 = scmp.eq.s32.totalorder %s27, 0
      %p159 = por %p157, %p158
      %s161 = sadd.s32 %s160, 1
      %p164 = scmp.eq.s32.totalorder %s21, 1
      %p165 = scmp.ne.s32.totalorder %s160, %s162
      %p166 = scmp.eq.s32.totalorder %s21, 0
      %p167 = por %p165, %p166
      %p168 = scmp.ne.s32.totalorder %s160, %s162
      %p169 = scmp.eq.s32.totalorder %s26, 1
      %p170 = por %p168, %p169
      %p171 = scmp.ne.s32.totalorder %s162, %s163
      %p172 = scmp.eq.s32.totalorder %s26, 0
      %p173 = por %p171, %p172
      %p174 = scmp.ne.s32.totalorder %s162, %s163
      %p175 = scmp.eq.s32.totalorder %s27, 1
      %p176 = por %p174, %p175
      %p178 = scmp.ne.s32.totalorder %s163, %s177
      %p179 = scmp.eq.s32.totalorder %s27, 0
      %p180 = por %p178, %p179
      %s181 = ssub.s32 %s21, %s28
      %p182 = scmp.eq.s32.totalorder %s181, 0
      %s184 = sadd.s32 %s183, 1
      %s185 = scalar_select %p182, %s183, %s184
      %p188 = pneg %p182
      %p189 = scmp.eq.s32.totalorder %s21, 1
      %p190 = por %p188, %p189
      %p191 = scmp.ne.s32.totalorder %s183, %s186
      %p192 = scmp.eq.s32.totalorder %s21, 0
      %p193 = por %p191, %p192
      %p194 = scmp.ne.s32.totalorder %s183, %s186
      %p195 = scmp.eq.s32.totalorder %s26, 1
      %p196 = por %p194, %p195
      %p197 = scmp.ne.s32.totalorder %s186, %s187
      %p198 = scmp.eq.s32.totalorder %s26, 0
      %p199 = por %p197, %p198
      %p200 = scmp.ne.s32.totalorder %s186, %s187
      %p201 = scmp.eq.s32.totalorder %s27, 1
      %p202 = por %p200, %p201
      %p204 = scmp.ne.s32.totalorder %s187, %s203
      %p205 = scmp.eq.s32.totalorder %s27, 0
      %p206 = por %p204, %p205
      %p207 = scmp.le.s32.totalorder 1, %s21
      %p208 = scmp.lt.s32.totalorder %s21, 3
      %p209 = pnand %p207, %p208
      %p210 = pneg %p209
      // Predicated region
      $region9: #{tpu_custom_call.1} parent=5 // pred_check
        _
      $region10: #{tpu_custom_call.1} parent=5 // pred_check_branch
        %212 = sbr.rel (%p209) target = $region12
      $region11: #{tpu_custom_call.1} parent=5 // pred_region
        %s213 = ssub.s32 %s21, 1
        // Predicated region
        $region13: #{tpu_custom_call.1} parent=11 // pred_check
          %p214 = pneg %p68
        $region14: #{tpu_custom_call.1} parent=11 // pred_check_branch
          %216 = sbr.rel (%p214) target = $region16
        $region15: #{tpu_custom_call.1} parent=11 // pred_region
          %218 = vsyncadd [#allocation6], 0
          %s219 = sshll.u32 %s1, 4
          %s220 = int_to_ptr.hbm [resolvable:$true] %s219
          %s221 = sshll.u32 [#allocation5], 4
          %s222 = int_to_ptr.vmem [resolvable:$true] %s221
          %227 = dma.hbm_to_vmem [thread:$0]  %s220, 2048, %s222, [#allocation6], 128, 128, 8
        $region16: #{tpu_custom_call.1} parent=11 // pred_fallthru
          _
        // Predicated region
        $region17: #{tpu_custom_call.1} parent=11 // pred_check
          %p228 = pneg %p89
        $region18: #{tpu_custom_call.1} parent=11 // pred_check_branch
          %230 = sbr.rel (%p228) target = $region20
        $region19: #{tpu_custom_call.1} parent=11 // pred_region
          _
        $region20: #{tpu_custom_call.1} parent=11 // pred_fallthru
          _
        // Predicated region
        $region21: #{tpu_custom_call.1} parent=11 // pred_check
          %p231 = pneg %p110
        $region22: #{tpu_custom_call.1} parent=11 // pred_check_branch
          %233 = sbr.rel (%p231) target = $region24
        $region23: #{tpu_custom_call.1} parent=11 // pred_region
          %235 = vsyncadd [#allocation6], 0
          %s236 = sshll.u32 %s3, 4
          %s237 = int_to_ptr.hbm [resolvable:$true] %s236
          %s238 = sshll.u32 [#allocation7], 4
          %s239 = int_to_ptr.vmem [resolvable:$true] %s238
          %244 = dma.hbm_to_vmem [thread:$0]  %s237, 2048, %s239, [#allocation6], 128, 128, 8
        $region24: #{tpu_custom_call.1} parent=11 // pred_fallthru
          _
        // Predicated region
        $region25: #{tpu_custom_call.1} parent=11 // pred_check
          %p245 = pneg %p131
        $region26: #{tpu_custom_call.1} parent=11 // pred_check_branch
          %247 = sbr.rel (%p245) target = $region28
        $region27: #{tpu_custom_call.1} parent=11 // pred_region
          %249 = vsyncadd [#allocation9], 0
          %s251 = sshll.u32 %s4, 4
          %s252 = int_to_ptr.hbm [resolvable:$true] %s251
          %s253 = sshll.u32 [#allocation8], 4
          %s254 = int_to_ptr.vmem [resolvable:$true] %s253
          %256 = dma.hbm_to_vmem [thread:$0]  %s252, 16, %s254, [#allocation9]
        $region28: #{tpu_custom_call.1} parent=11 // pred_fallthru
          _
        // Predicated region
        $region29: #{tpu_custom_call.1} parent=11 // pred_check
          %p257 = pneg %p152
        $region30: #{tpu_custom_call.1} parent=11 // pred_check_branch
          %259 = sbr.rel (%p257) target = $region32
        $region31: #{tpu_custom_call.1} parent=11 // pred_region
          %261 = vsyncadd [#allocation9], 0
          %s262 = sshll.u32 %s5, 4
          %s263 = int_to_ptr.hbm [resolvable:$true] %s262
          %s264 = sshll.u32 [#allocation10], 4
          %s265 = int_to_ptr.vmem [resolvable:$true] %s264
          %270 = dma.hbm_to_vmem [thread:$0]  %s263, 4096, %s265, [#allocation9], 256, 256, 16
        $region32: #{tpu_custom_call.1} parent=11 // pred_fallthru
          _
        // Predicated region
        $region33: #{tpu_custom_call.1} parent=11 // pred_check
          %p271 = pneg %p173
        $region34: #{tpu_custom_call.1} parent=11 // pred_check_branch
          %273 = sbr.rel (%p271) target = $region36
        $region35: #{tpu_custom_call.1} parent=11 // pred_region
          _
        $region36: #{tpu_custom_call.1} parent=11 // pred_fallthru
          _
      $region12: #{tpu_custom_call.1} parent=5 // pred_fallthru
        _
      %p274 = scmp.lt.s32.totalorder %s21, 2
      // Predicated region
      $region37: #{tpu_custom_call.1} parent=5 // pred_check
        %p275 = pneg %p274
      $region38: #{tpu_custom_call.1} parent=5 // pred_check_branch
        %277 = sbr.rel (%p275) target = $region40
      $region39: #{tpu_custom_call.1} parent=5 // pred_region
        // Predicated region
        $region41: #{tpu_custom_call.1} parent=39 // pred_check
          %p278 = pneg %p41
        $region42: #{tpu_custom_call.1} parent=39 // pred_check_branch
          %280 = sbr.rel (%p278) target = $region44
        $region43: #{tpu_custom_call.1} parent=39 // pred_region
          %s281 = sand.u32 %s31, 1
          %s282 = scalar_lea.sflag [#allocation3], %s281
          %s283 = sand.u32 %s31, 1
          %s284 = smul.addr %s283, 8
          %s285 = scalar_lea.vmem [#allocation2], %s284
          %287 = vsyncadd %s282, 0
          %s288 = smul.addr %s21, 8
          %s289 = scalar_lea.hbm %s0, %s288
          %s291 = sshll.u32 %s289, 4
          %s292 = int_to_ptr.hbm [resolvable:$true] %s291
          %s293 = sshll.u32 %s285, 4
          %s294 = int_to_ptr.vmem [resolvable:$true] %s293
          %296 = dma.hbm_to_vmem [thread:$0]  %s292, 128, %s294, %s282
        $region44: #{tpu_custom_call.1} parent=39 // pred_fallthru
          _
      $region40: #{tpu_custom_call.1} parent=5 // pred_fallthru
        _
      %p297 = scmp.le.s32.totalorder 1, %s21
      %p298 = scmp.lt.s32.totalorder %s21, 3
      %p299 = pnand %p297, %p298
      %p300 = pneg %p299
      // Predicated region
      $region45: #{tpu_custom_call.1} parent=5 // pred_check
        _
      $region46: #{tpu_custom_call.1} parent=5 // pred_check_branch
        %302 = sbr.rel (%p299) target = $region48
      $region47: #{tpu_custom_call.1} parent=5 // pred_region
        %s303 = ssub.s32 %s21, 1
        %s304 = sand.u32 %s34, 1
        %s305 = scalar_lea.sflag [#allocation3], %s304
        %s306 = sand.u32 %s34, 1
        %s307 = smul.addr %s306, 8
        %s308 = scalar_lea.vmem [#allocation2], %s307
        // Predicated region
        $region49: #{tpu_custom_call.1} parent=47 // pred_check
          %p309 = pneg %p47
        $region50: #{tpu_custom_call.1} parent=47 // pred_check_branch
          %311 = sbr.rel (%p309) target = $region52
        $region51: #{tpu_custom_call.1} parent=47 // pred_region
          %313 = dma.done %s305, 128
        $region52: #{tpu_custom_call.1} parent=47 // pred_fallthru
          _
        // Predicated region
        $region53: #{tpu_custom_call.1} parent=47 // pred_check
          %p314 = pneg %p68
        $region54: #{tpu_custom_call.1} parent=47 // pred_check_branch
          %316 = sbr.rel (%p314) target = $region56
        $region55: #{tpu_custom_call.1} parent=47 // pred_region
          %318 = dma.done [#allocation6], 2048
        $region56: #{tpu_custom_call.1} parent=47 // pred_fallthru
          _
        // Predicated region
        $region57: #{tpu_custom_call.1} parent=47 // pred_check
          %p319 = pneg %p110
        $region58: #{tpu_custom_call.1} parent=47 // pred_check_branch
          %321 = sbr.rel (%p319) target = $region60
        $region59: #{tpu_custom_call.1} parent=47 // pred_region
          %323 = dma.done [#allocation6], 2048
        $region60: #{tpu_custom_call.1} parent=47 // pred_fallthru
          _
        // Predicated region
        $region61: #{tpu_custom_call.1} parent=47 // pred_check
          %p324 = pneg %p131
        $region62: #{tpu_custom_call.1} parent=47 // pred_check_branch
          %326 = sbr.rel (%p324) target = $region64
        $region63: #{tpu_custom_call.1} parent=47 // pred_region
          %328 = dma.done [#allocation9], 16
        $region64: #{tpu_custom_call.1} parent=47 // pred_fallthru
          _
        // Predicated region
        $region65: #{tpu_custom_call.1} parent=47 // pred_check
          %p329 = pneg %p152
        $region66: #{tpu_custom_call.1} parent=47 // pred_check_branch
          %331 = sbr.rel (%p329) target = $region68
        $region67: #{tpu_custom_call.1} parent=47 // pred_region
          %333 = dma.done [#allocation9], 4096
        $region68: #{tpu_custom_call.1} parent=47 // pred_fallthru
          _
        %s334 = sand.u32 %s34, 1
        %s335 = scalar_lea.sflag [#allocation3], %s334
        %s336 = sand.u32 %s34, 1
        %s337 = smul.addr %s336, 8
        %s338 = scalar_lea.vmem [#allocation2], %s337
        %p339 = pneg %p47
        %p340 = pneg %p44
        %p341 = pneg %p68
        %p342 = pneg %p65
        %p343 = pneg %p89
        %p344 = pneg %p86
        %p345 = pneg %p110
        %p346 = pneg %p107
        %p347 = pneg %p131
        %p348 = pneg %p128
        %p349 = pneg %p152
        %p350 = pneg %p149
        %p351 = pneg %p173
        %p352 = pneg %p170
        %p353 = pneg %p199
        %p354 = pneg %p196
        %s355 = sand.u32 %s186, 1
        %s356 = scalar_lea.sflag [#allocation4], %s355
        %s357 = sand.u32 %s186, 1
        %s358 = smul.addr %s357, 16
        %s359 = scalar_lea.vmem [#allocation11], %s358
        %v360 = vld [vmem:[%s308] sm:$0xff]
        %v361 = vld [vmem:[#allocation5] sm:$0xff]
        %v362 = vld [vmem:[#allocation5 + $0x8] sm:$0xff]
        %v363 = vld [vmem:[#allocation5 + $0x10] sm:$0xff]
        %v364 = vld [vmem:[#allocation5 + $0x18] sm:$0xff]
        %v365 = vld [vmem:[#allocation5 + $0x20] sm:$0xff]
        %v366 = vld [vmem:[#allocation5 + $0x28] sm:$0xff]
        %v367 = vld [vmem:[#allocation5 + $0x30] sm:$0xff]
        %v368 = vld [vmem:[#allocation5 + $0x38] sm:$0xff]
        %v369 = vld [vmem:[#allocation5 + $0x40] sm:$0xff]
        %v370 = vld [vmem:[#allocation5 + $0x48] sm:$0xff]
        %v371 = vld [vmem:[#allocation5 + $0x50] sm:$0xff]
        %v372 = vld [vmem:[#allocation5 + $0x58] sm:$0xff]
        %v373 = vld [vmem:[#allocation5 + $0x60] sm:$0xff]
        %v374 = vld [vmem:[#allocation5 + $0x68] sm:$0xff]
        %v375 = vld [vmem:[#allocation5 + $0x70] sm:$0xff]
        %v376 = vld [vmem:[#allocation5 + $0x78] sm:$0xff]
        %v377 = vld [vmem:[%s2] sm:$0x1]
        %v379 = vperm.slane %v377, 0
        %381 = vmatpush.msra.mxu0 %v376
        %382 = vmatpush.msra.mxu0 %v375
        %383 = vmatpush.msra.mxu0 %v374
        %384 = vmatpush.msra.mxu0 %v373
        %385 = vmatpush.msra.mxu0 %v372
        %386 = vmatpush.msra.mxu0 %v371
        %387 = vmatpush.msra.mxu0 %v370
        %388 = vmatpush.msra.mxu0 %v369
        %389 = vmatpush.msra.mxu0 %v368
        %390 = vmatpush.msra.mxu0 %v367
        %391 = vmatpush.msra.mxu0 %v366
        %392 = vmatpush.msra.mxu0 %v365
        %393 = vmatpush.msra.mxu0 %v364
        %394 = vmatpush.msra.mxu0 %v363
        %395 = vmatpush.msra.mxu0 %v362
        %396 = vmatpush.msra.mxu0 %v361
        %397 = vmatmul.f32.gmra.mxu0 %v360
        %v398 = vpop.f32.mrf.mxu0
        %v399 = vadd.f32 %v379, %v398
        %400 = vdwg.mxu0
        %v401 = vmax.f32 %v399, 0.0
        %v402 = vld [vmem:[#allocation7] sm:$0xff]
        %v403 = vld [vmem:[#allocation7 + $0x8] sm:$0xff]
        %v404 = vld [vmem:[#allocation7 + $0x10] sm:$0xff]
        %v405 = vld [vmem:[#allocation7 + $0x18] sm:$0xff]
        %v406 = vld [vmem:[#allocation7 + $0x20] sm:$0xff]
        %v407 = vld [vmem:[#allocation7 + $0x28] sm:$0xff]
        %v408 = vld [vmem:[#allocation7 + $0x30] sm:$0xff]
        %v409 = vld [vmem:[#allocation7 + $0x38] sm:$0xff]
        %v410 = vld [vmem:[#allocation7 + $0x40] sm:$0xff]
        %v411 = vld [vmem:[#allocation7 + $0x48] sm:$0xff]
        %v412 = vld [vmem:[#allocation7 + $0x50] sm:$0xff]
        %v413 = vld [vmem:[#allocation7 + $0x58] sm:$0xff]
        %v414 = vld [vmem:[#allocation7 + $0x60] sm:$0xff]
        %v415 = vld [vmem:[#allocation7 + $0x68] sm:$0xff]
        %v416 = vld [vmem:[#allocation7 + $0x70] sm:$0xff]
        %v417 = vld [vmem:[#allocation7 + $0x78] sm:$0xff]
        %v418 = vld [vmem:[#allocation8] sm:$0x1]
        %v420 = vperm.slane %v418, 0
        %422 = vmatpush.msra.mxu0 %v417
        %423 = vmatpush.msra.mxu0 %v416
        %424 = vmatpush.msra.mxu0 %v415
        %425 = vmatpush.msra.mxu0 %v414
        %426 = vmatpush.msra.mxu0 %v413
        %427 = vmatpush.msra.mxu0 %v412
        %428 = vmatpush.msra.mxu0 %v411
        %429 = vmatpush.msra.mxu0 %v410
        %430 = vmatpush.msra.mxu0 %v409
        %431 = vmatpush.msra.mxu0 %v408
        %432 = vmatpush.msra.mxu0 %v407
        %433 = vmatpush.msra.mxu0 %v406
        %434 = vmatpush.msra.mxu0 %v405
        %435 = vmatpush.msra.mxu0 %v404
        %436 = vmatpush.msra.mxu0 %v403
        %437 = vmatpush.msra.mxu0 %v402
        %438 = vmatmul.f32.gmra.mxu0 %v401
        %v439 = vpop.f32.mrf.mxu0
        %v440 = vadd.f32 %v420, %v439
        %441 = vdwg.mxu0
        %v442 = vmax.f32 %v440, 0.0
        %v443 = vld [vmem:[#allocation10] sm:$0xff]
        %v444 = vld [vmem:[#allocation10 + $0x8] sm:$0xff]
        %v445 = vld [vmem:[#allocation10 + $0x10] sm:$0xff]
        %v446 = vld [vmem:[#allocation10 + $0x18] sm:$0xff]
        %v447 = vld [vmem:[#allocation10 + $0x20] sm:$0xff]
        %v448 = vld [vmem:[#allocation10 + $0x28] sm:$0xff]
        %v449 = vld [vmem:[#allocation10 + $0x30] sm:$0xff]
        %v450 = vld [vmem:[#allocation10 + $0x38] sm:$0xff]
        %v451 = vld [vmem:[#allocation10 + $0x40] sm:$0xff]
        %v452 = vld [vmem:[#allocation10 + $0x48] sm:$0xff]
        %v453 = vld [vmem:[#allocation10 + $0x50] sm:$0xff]
        %v454 = vld [vmem:[#allocation10 + $0x58] sm:$0xff]
        %v455 = vld [vmem:[#allocation10 + $0x60] sm:$0xff]
        %v456 = vld [vmem:[#allocation10 + $0x68] sm:$0xff]
        %v457 = vld [vmem:[#allocation10 + $0x70] sm:$0xff]
        %v458 = vld [vmem:[#allocation10 + $0x78] sm:$0xff]
        %v459 = vld [vmem:[#allocation10 + $0x80] sm:$0xff]
        %v460 = vld [vmem:[#allocation10 + $0x88] sm:$0xff]
        %v461 = vld [vmem:[#allocation10 + $0x90] sm:$0xff]
        %v462 = vld [vmem:[#allocation10 + $0x98] sm:$0xff]
        %v463 = vld [vmem:[#allocation10 + $0xa0] sm:$0xff]
        %v464 = vld [vmem:[#allocation10 + $0xa8] sm:$0xff]
        %v465 = vld [vmem:[#allocation10 + $0xb0] sm:$0xff]
        %v466 = vld [vmem:[#allocation10 + $0xb8] sm:$0xff]
        %v467 = vld [vmem:[#allocation10 + $0xc0] sm:$0xff]
        %v468 = vld [vmem:[#allocation10 + $0xc8] sm:$0xff]
        %v469 = vld [vmem:[#allocation10 + $0xd0] sm:$0xff]
        %v470 = vld [vmem:[#allocation10 + $0xd8] sm:$0xff]
        %v471 = vld [vmem:[#allocation10 + $0xe0] sm:$0xff]
        %v472 = vld [vmem:[#allocation10 + $0xe8] sm:$0xff]
        %v473 = vld [vmem:[#allocation10 + $0xf0] sm:$0xff]
        %v474 = vld [vmem:[#allocation10 + $0xf8] sm:$0xff]
        %v475 = vld [vmem:[%s6] sm:$0x3]
        %v477 = vperm.slane %v475, 0
        %v478 = vperm.slane %v475, 1
        %481 = vmatpush.msra.mxu0 %v473
        %482 = vmatpush.msra.mxu0 %v471
        %483 = vmatpush.msra.mxu0 %v469
        %484 = vmatpush.msra.mxu0 %v467
        %485 = vmatpush.msra.mxu0 %v465
        %486 = vmatpush.msra.mxu0 %v463
        %487 = vmatpush.msra.mxu0 %v461
        %488 = vmatpush.msra.mxu0 %v459
        %489 = vmatpush.msra.mxu0 %v457
        %490 = vmatpush.msra.mxu0 %v455
        %491 = vmatpush.msra.mxu0 %v453
        %492 = vmatpush.msra.mxu0 %v451
        %493 = vmatpush.msra.mxu0 %v449
        %494 = vmatpush.msra.mxu0 %v447
        %495 = vmatpush.msra.mxu0 %v445
        %496 = vmatpush.msra.mxu0 %v443
        %497 = vmatmul.f32.gmra.mxu0 %v442
        %v498 = vpop.f32.mrf.mxu0
        %v499 = vadd.f32 %v477, %v498
        %500 = vdwg.mxu0
        %501 = vmatpush.msra.mxu0 %v474
        %502 = vmatpush.msra.mxu0 %v472
        %503 = vmatpush.msra.mxu0 %v470
        %504 = vmatpush.msra.mxu0 %v468
        %505 = vmatpush.msra.mxu0 %v466
        %506 = vmatpush.msra.mxu0 %v464
        %507 = vmatpush.msra.mxu0 %v462
        %508 = vmatpush.msra.mxu0 %v460
        %509 = vmatpush.msra.mxu0 %v458
        %510 = vmatpush.msra.mxu0 %v456
        %511 = vmatpush.msra.mxu0 %v454
        %512 = vmatpush.msra.mxu0 %v452
        %513 = vmatpush.msra.mxu0 %v450
        %514 = vmatpush.msra.mxu0 %v448
        %515 = vmatpush.msra.mxu0 %v446
        %516 = vmatpush.msra.mxu0 %v444
        %517 = vmatmul.f32.gmra.mxu0 %v442
        %v518 = vpop.f32.mrf.mxu0
        %v519 = vadd.f32 %v478, %v518
        %520 = vdwg.mxu0
        %521 = vst [vmem:[%s359] sm:$0xff] %v499
        %522 = vst [vmem:[%s359 + $0x8] sm:$0xff] %v519
        %s523 = sand.u32 %s186, 1
        %s524 = scalar_lea.sflag [#allocation4], %s523
        %s525 = sand.u32 %s186, 1
        %s526 = smul.addr %s525, 16
        %s527 = scalar_lea.vmem [#allocation11], %s526
        // Predicated region
        $region69: #{tpu_custom_call.1} parent=47 // pred_check
          %p528 = pneg %p196
        $region70: #{tpu_custom_call.1} parent=47 // pred_check_branch
          %530 = sbr.rel (%p528) target = $region72
        $region71: #{tpu_custom_call.1} parent=47 // pred_region
          %532 = vsyncadd %s524, 0
          %s533 = smul.addr %s26, 2
          %s534 = smul.addr %s533, 8
          %s535 = scalar_lea.hbm %s7, %s534
          %s537 = sshll.u32 %s527, 4
          %s538 = int_to_ptr.vmem [resolvable:$true] %s537
          %s539 = sshll.u32 %s535, 4
          %s540 = int_to_ptr.hbm [resolvable:$true] %s539
          %542 = dma.vmem_to_hbm [thread:$0]  %s538, 256, %s540, %s524
        $region72: #{tpu_custom_call.1} parent=47 // pred_fallthru
          _
      $region48: #{tpu_custom_call.1} parent=5 // pred_fallthru
        _
      %p543 = scmp.le.s32.totalorder 2, %s21
      // Predicated region
      $region73: #{tpu_custom_call.1} parent=5 // pred_check
        %p544 = pneg %p543
      $region74: #{tpu_custom_call.1} parent=5 // pred_check_branch
        %546 = sbr.rel (%p544) target = $region76
      $region75: #{tpu_custom_call.1} parent=5 // pred_region
        %s547 = ssub.s32 %s21, 2
        // Predicated region
        $region77: #{tpu_custom_call.1} parent=75 // pred_check
          %p548 = pneg %p202
        $region78: #{tpu_custom_call.1} parent=75 // pred_check_branch
          %550 = sbr.rel (%p548) target = $region80
        $region79: #{tpu_custom_call.1} parent=75 // pred_region
          %s551 = sand.u32 %s187, 1
          %s552 = scalar_lea.sflag [#allocation4], %s551
          %s553 = sand.u32 %s187, 1
          %s554 = smul.addr %s553, 16
          %s555 = scalar_lea.vmem [#allocation11], %s554
          %557 = dma.done %s552, 256
        $region80: #{tpu_custom_call.1} parent=75 // pred_fallthru
          _
      $region76: #{tpu_custom_call.1} parent=5 // pred_fallthru
        _
    $region6: #{tpu_custom_call.1} parent=1 // loop_footer
      %s25 = sadd.s32 1, %s21
    $region7: #{tpu_custom_call.1} parent=1 // loop_footer_branch
      %20 = sbr.rel target = $region3
    $region8: #{tpu_custom_call.1} parent=1 // loop_exit
      _
    %558 = vsyncpa [#allocation3], 1
    %s559 = scalar_lea.sflag [#allocation3], 1
    %560 = vsyncpa %s559, 1
    %561 = vsyncpa [#allocation6], 1
    %562 = vsyncpa [#allocation9], 1
    %563 = vsyncpa [#allocation4], 1
    %s564 = scalar_lea.sflag [#allocation4], 1
    %565 = vsyncpa %s564, 1

// kernel: tpu_custom_call.1
$region0: #{tpu_custom_call.1}
  #allocation0 [shape = 'u32[]', space=smem, size = 0x4, offset = 0x4, fixed_abs, tag = 'smem constant byte address 0x4 - core index']
  #allocation1 [shape = 'u32[72,128]{1,0:T(1,128)}', space=vmem, size = 0x9000, scoped, tag = 'internal scratch']
  %s0 = inlined_call_operand.hbm [shape: f32[16,128], index: 0, kind: input, shape index: {}]
  %s1 = inlined_call_operand.hbm [shape: f32[128,128], index: 1, kind: input, shape index: {}]
  %s2 = inlined_call_operand.vmem [shape: f32[1,128], index: 2, kind: input, shape index: {}]
  %s3 = inlined_call_operand.hbm [shape: f32[128,128], index: 3, kind: input, shape index: {}]
  %s4 = inlined_call_operand.hbm [shape: f32[1,128], index: 4, kind: input, shape index: {}]
  %s5 = inlined_call_operand.hbm [shape: f32[128,256], index: 5, kind: input, shape index: {}]
  %s6 = inlined_call_operand.vmem [shape: f32[1,256], index: 6, kind: input, shape index: {}]
  %s7 = inlined_call_operand.hbm [shape: f32[16,256], index: 7, kind: output, shape index: {}]
  %s8 = sld [smem:[#allocation0]]
  $region81: #{tpu_custom_call.1} parent=0
    _
  %s10 = ssub.s32 1, %s8
  %s11 = scalar_select 0, %s10, %s8
  $region1: #{tpu_custom_call.1} parent=0
    #allocation2 [shape = 'u8[8192]{0}', space=vmem, size = 0x2000, scoped, tag = 'input window, operand 0']
    #allocation3 [shape = 's32[2]{0}', space=sflag, size = 0x8, scoped, tag = 'scoped memory for tpu_custom_call.1']
    #allocation4 [shape = 's32[2]{0}', space=sflag, size = 0x8, scoped, tag = 'scoped memory for tpu_custom_call.1']
    #allocation5 [shape = 'u8[65536]{0}', space=vmem, size = 0x10000, scoped, tag = 'input window, operand 1, single buffered']
    #allocation6 [shape = 's32[1]{0}', space=sflag, size = 0x4, scoped, tag = 'scoped memory for tpu_custom_call.1']
    #allocation7 [shape = 'u8[65536]{0}', space=vmem, size = 0x10000, scoped, tag = 'input window, operand 3, single buffered']
    #allocation8 [shape = 'u8[512]{0}', space=vmem, size = 0x400, scoped, tag = 'input window, operand 4, single buffered']
    #allocation9 [shape = 's32[1]{0}', space=sflag, size = 0x4, scoped, tag = 'scoped memory for tpu_custom_call.1']
    #allocation10 [shape = 'u8[131072]{0}', space=vmem, size = 0x20000, scoped, tag = 'input window, operand 5, single buffered']
    #allocation11 [shape = 'u8[16384]{0}', space=vmem, size = 0x4000, scoped, tag = 'output window, operand 0']
    %12 = vsyncpa [#allocation3], 0
    %s13 = scalar_lea.sflag [#allocation3], 1
    %14 = vsyncpa %s13, 0
    %15 = vsyncpa [#allocation6], 0
    %16 = vsyncpa [#allocation9], 0
    %17 = vsyncpa [#allocation4], 0
    %s18 = scalar_lea.sflag [#allocation4], 1
    %19 = vsyncpa %s18, 0
    loop: start=0, step=1, limit=4
    $region2: #{tpu_custom_call.1} parent=1 // loop_pre_header
      _
    $region3: #{tpu_custom_call.1} parent=1 // loop_header
      %s21 = sphi 0, %s25
      %p22 = scmp.ge.s32.totalorder %s21, 4
      %s31 = sphi 0, %s33
      %s34 = sphi 0, %s31
      %s35 = sphi 0, %s34
      %s51 = sphi 0, %s35
      %s55 = sphi 0, %s55
      %s57 = sphi 0, %s55
      %s58 = sphi 0, %s57
      %s72 = sphi 0, %s58
      %s76 = sphi 0, %s76
      %s78 = sphi 0, %s76
      %s79 = sphi 0, %s78
      %s93 = sphi 0, %s79
      %s97 = sphi 0, %s97
      %s99 = sphi 0, %s97
      %s100 = sphi 0, %s99
      %s114 = sphi 0, %s100
      %s118 = sphi 0, %s118
      %s120 = sphi 0, %s118
      %s121 = sphi 0, %s120
      %s135 = sphi 0, %s121
      %s139 = sphi 0, %s139
      %s141 = sphi 0, %s139
      %s142 = sphi 0, %s141
      %s156 = sphi 0, %s142
      %s160 = sphi 0, %s160
      %s162 = sphi 0, %s160
      %s163 = sphi 0, %s162
      %s177 = sphi 0, %s163
      %s183 = sphi 0, %s185
      %s186 = sphi 0, %s183
      %s187 = sphi 0, %s186
      %s203 = sphi 0, %s187
    $region4: #{tpu_custom_call.1} parent=1 // loop_header_branch
      %24 = sbr.rel (%p22) target = $region8
    $region5: #{tpu_custom_call.1} parent=1 // loop_body
      %s26 = ssub.s32 %s21, 1
      %s27 = ssub.s32 %s21, 2
      %s28 = sadd.s32 %s21, 1
      %s29 = ssub.s32 %s21, %s28
      %p30 = scmp.eq.s32.totalorder %s29, 0
      %s32 = sadd.s32 %s31, 1
      %s33 = scalar_select %p30, %s31, %s32
      %p36 = pneg %p30
      %p37 = scmp.eq.s32.totalorder %s21, 1
      %p38 = por %p36, %p37
      %p39 = scmp.ne.s32.totalorder %s31, %s34
      %p40 = scmp.eq.s32.totalorder %s21, 0
      %p41 = por %p39, %p40
      %p42 = scmp.ne.s32.totalorder %s31, %s34
      %p43 = scmp.eq.s32.totalorder %s26, 1
      %p44 = por %p42, %p43
      %p45 = scmp.ne.s32.totalorder %s34, %s35
      %p46 = scmp.eq.s32.totalorder %s26, 0
      %p47 = por %p45, %p46
      %p48 = scmp.ne.s32.totalorder %s34, %s35
      %p49 = scmp.eq.s32.totalorder %s27, 1
      %p50 = por %p48, %p49
      %p52 = scmp.ne.s32.totalorder %s35, %s51
      %p53 = scmp.eq.s32.totalorder %s27, 0
      %p54 = por %p52, %p53
      %s56 = sadd.s32 %s55, 1
      %p59 = scmp.eq.s32.totalorder %s21, 1
      %p60 = scmp.ne.s32.totalorder %s55, %s57
      %p61 = scmp.eq.s32.totalorder %s21, 0
      %p62 = por %p60, %p61
      %p63 = scmp.ne.s32.totalorder %s55, %s57
      %p64 = scmp.eq.s32.totalorder %s26, 1
      %p65 = por %p63, %p64
      %p66 = scmp.ne.s32.totalorder %s57, %s58
      %p67 = scmp.eq.s32.totalorder %s26, 0
      %p68 = por %p66, %p67
      %p69 = scmp.ne.s32.totalorder %s57, %s58
      %p70 = scmp.eq.s32.totalorder %s27, 1
      %p71 = por %p69, %p70
      %p73 = scmp.ne.s32.totalorder %s58, %s72
      %p74 = scmp.eq.s32.totalorder %s27, 0
      %p75 = por %p73, %p74
      %s77 = sadd.s32 %s76, 1
      %p80 = scmp.eq.s32.totalorder %s21, 1
      %p81 = scmp.ne.s32.totalorder %s76, %s78
      %p82 = scmp.eq.s32.totalorder %s21, 0
      %p83 = por %p81, %p82
      %p84 = scmp.ne.s32.totalorder %s76, %s78
      %p85 = scmp.eq.s32.totalorder %s26, 1
      %p86 = por %p84, %p85
      %p87 = scmp.ne.s32.totalorder %s78, %s79
      %p88 = scmp.eq.s32.totalorder %s26, 0
      %p89 = por %p87, %p88
      %p90 = scmp.ne.s32.totalorder %s78, %s79
      %p91 = scmp.eq.s32.totalorder %s27, 1
      %p92 = por %p90, %p91
      %p94 = scmp.ne.s32.totalorder %s79, %s93
      %p95 = scmp.eq.s32.totalorder %s27, 0
      %p96 = por %p94, %p95
      %s98 = sadd.s32 %s97, 1
      %p101 = scmp.eq.s32.totalorder %s21, 1
      %p102 = scmp.ne.s32.totalorder %s97, %s99
      %p103 = scmp.eq.s32.totalorder %s21, 0
      %p104 = por %p102, %p103
      %p105 = scmp.ne.s32.totalorder %s97, %s99
      %p106 = scmp.eq.s32.totalorder %s26, 1
      %p107 = por %p105, %p106
      %p108 = scmp.ne.s32.totalorder %s99, %s100
      %p109 = scmp.eq.s32.totalorder %s26, 0
      %p110 = por %p108, %p109
      %p111 = scmp.ne.s32.totalorder %s99, %s100
      %p112 = scmp.eq.s32.totalorder %s27, 1
      %p113 = por %p111, %p112
      %p115 = scmp.ne.s32.totalorder %s100, %s114
      %p116 = scmp.eq.s32.totalorder %s27, 0
      %p117 = por %p115, %p116
      %s119 = sadd.s32 %s118, 1
      %p122 = scmp.eq.s32.totalorder %s21, 1
      %p123 = scmp.ne.s32.totalorder %s118, %s120
      %p124 = scmp.eq.s32.totalorder %s21, 0
      %p125 = por %p123, %p124
      %p126 = scmp.ne.s32.totalorder %s118, %s120
      %p127 = scmp.eq.s32.totalorder %s26, 1
      %p128 = por %p126, %p127
      %p129 = scmp.ne.s32.totalorder %s120, %s121
      %p130 = scmp.eq.s32.totalorder %s26, 0
      %p131 = por %p129, %p130
      %p132 = scmp.ne.s32.totalorder %s120, %s121
      %p133 = scmp.eq.s32.totalorder %s27, 1
      %p134 = por %p132, %p133
      %p136 = scmp.ne.s32.totalorder %s121, %s135
      %p137 = scmp.eq.s32.totalorder %s27, 0
      %p138 = por %p136, %p137
      %s140 = sadd.s32 %s139, 1
      %p143 = scmp.eq.s32.totalorder %s21, 1
      %p144 = scmp.ne.s32.totalorder %s139, %s141
      %p145 = scmp.eq.s32.totalorder %s21, 0
      %p146 = por %p144, %p145
      %p147 = scmp.ne.s32.totalorder %s139, %s141
      %p148 = scmp.eq.s32.totalorder %s26, 1
      %p149 = por %p147, %p148
      %p150 = scmp.ne.s32.totalorder %s141, %s142
      %p151 = scmp.eq.s32.totalorder %s26, 0
      %p152 = por %p150, %p151
      %p153 = scmp.ne.s32.totalorder %s141, %s142
      %p154 = scmp.eq.s32.totalorder %s27, 1
      %p155 = por %p153, %p154
      %p157 = scmp.ne.s32.totalorder %s142, %s156
      %p158 = scmp.eq.s32.totalorder %s27, 0
      %p159 = por %p157, %p158
      %s161 = sadd.s32 %s160, 1
      %p164 = scmp.eq.s32.totalorder %s21, 1
      %p165 = scmp.ne.s32.totalorder %s160, %s162
      %p166 = scmp.eq.s32.totalorder %s21, 0
      %p167 = por %p165, %p166
      %p168 = scmp.ne.s32.totalorder %s160, %s162
      %p169 = scmp.eq.s32.totalorder %s26, 1
      %p170 = por %p168, %p169
      %p171 = scmp.ne.s32.totalorder %s162, %s163
      %p172 = scmp.eq.s32.totalorder %s26, 0
      %p173 = por %p171, %p172
      %p174 = scmp.ne.s32.totalorder %s162, %s163
      %p175 = scmp.eq.s32.totalorder %s27, 1
      %p176 = por %p174, %p175
      %p178 = scmp.ne.s32.totalorder %s163, %s177
      %p179 = scmp.eq.s32.totalorder %s27, 0
      %p180 = por %p178, %p179
      %s181 = ssub.s32 %s21, %s28
      %p182 = scmp.eq.s32.totalorder %s181, 0
      %s184 = sadd.s32 %s183, 1
      %s185 = scalar_select %p182, %s183, %s184
      %p188 = pneg %p182
      %p189 = scmp.eq.s32.totalorder %s21, 1
      %p190 = por %p188, %p189
      %p191 = scmp.ne.s32.totalorder %s183, %s186
      %p192 = scmp.eq.s32.totalorder %s21, 0
      %p193 = por %p191, %p192
      %p194 = scmp.ne.s32.totalorder %s183, %s186
      %p195 = scmp.eq.s32.totalorder %s26, 1
      %p196 = por %p194, %p195
      %p197 = scmp.ne.s32.totalorder %s186, %s187
      %p198 = scmp.eq.s32.totalorder %s26, 0
      %p199 = por %p197, %p198
      %p200 = scmp.ne.s32.totalorder %s186, %s187
      %p201 = scmp.eq.s32.totalorder %s27, 1
      %p202 = por %p200, %p201
      %p204 = scmp.ne.s32.totalorder %s187, %s203
      %p205 = scmp.eq.s32.totalorder %s27, 0
      %p206 = por %p204, %p205
      %p207 = scmp.le.s32.totalorder 1, %s21
      %p208 = scmp.lt.s32.totalorder %s21, 3
      %p209 = pnand %p207, %p208
      %p210 = pneg %p209
      // Predicated region
      $region9: #{tpu_custom_call.1} parent=5 // pred_check
        _
      $region10: #{tpu_custom_call.1} parent=5 // pred_check_branch
        %212 = sbr.rel (%p209) target = $region12
      $region11: #{tpu_custom_call.1} parent=5 // pred_region
        %s213 = ssub.s32 %s21, 1
        // Predicated region
        $region13: #{tpu_custom_call.1} parent=11 // pred_check
          %p214 = pneg %p68
        $region14: #{tpu_custom_call.1} parent=11 // pred_check_branch
          %216 = sbr.rel (%p214) target = $region16
        $region15: #{tpu_custom_call.1} parent=11 // pred_region
          %218 = vsyncadd [#allocation6], 0
          %s219 = sshll.u32 %s1, 4
          %s220 = int_to_ptr.hbm [resolvable:$true] %s219
          %s221 = sshll.u32 [#allocation5], 4
          %s222 = int_to_ptr.vmem [resolvable:$true] %s221
          %227 = dma.hbm_to_vmem [thread:$0]  %s220, 2048, %s222, [#allocation6], 128, 128, 8
        $region16: #{tpu_custom_call.1} parent=11 // pred_fallthru
          _
        // Predicated region
        $region17: #{tpu_custom_call.1} parent=11 // pred_check
          %p228 = pneg %p89
        $region18: #{tpu_custom_call.1} parent=11 // pred_check_branch
          %230 = sbr.rel (%p228) target = $region20
        $region19: #{tpu_custom_call.1} parent=11 // pred_region
          _
        $region20: #{tpu_custom_call.1} parent=11 // pred_fallthru
          _
        // Predicated region
        $region21: #{tpu_custom_call.1} parent=11 // pred_check
          %p231 = pneg %p110
        $region22: #{tpu_custom_call.1} parent=11 // pred_check_branch
          %233 = sbr.rel (%p231) target = $region24
        $region23: #{tpu_custom_call.1} parent=11 // pred_region
          %235 = vsyncadd [#allocation6], 0
          %s236 = sshll.u32 %s3, 4
          %s237 = int_to_ptr.hbm [resolvable:$true] %s236
          %s238 = sshll.u32 [#allocation7], 4
          %s239 = int_to_ptr.vmem [resolvable:$true] %s238
          %244 = dma.hbm_to_vmem [thread:$0]  %s237, 2048, %s239, [#allocation6], 128, 128, 8
        $region24: #{tpu_custom_call.1} parent=11 // pred_fallthru
          _
        // Predicated region
        $region25: #{tpu_custom_call.1} parent=11 // pred_check
          %p245 = pneg %p131
        $region26: #{tpu_custom_call.1} parent=11 // pred_check_branch
          %247 = sbr.rel (%p245) target = $region28
        $region27: #{tpu_custom_call.1} parent=11 // pred_region
          %249 = vsyncadd [#allocation9], 0
          %s251 = sshll.u32 %s4, 4
          %s252 = int_to_ptr.hbm [resolvable:$true] %s251
          %s253 = sshll.u32 [#allocation8], 4
          %s254 = int_to_ptr.vmem [resolvable:$true] %s253
          %256 = dma.hbm_to_vmem [thread:$0]  %s252, 16, %s254, [#allocation9]
        $region28: #{tpu_custom_call.1} parent=11 // pred_fallthru
          _
        // Predicated region
        $region29: #{tpu_custom_call.1} parent=11 // pred_check
          %p257 = pneg %p152
        $region30: #{tpu_custom_call.1} parent=11 // pred_check_branch
          %259 = sbr.rel (%p257) target = $region32
        $region31: #{tpu_custom_call.1} parent=11 // pred_region
          %261 = vsyncadd [#allocation9], 0
          %s262 = sshll.u32 %s5, 4
          %s263 = int_to_ptr.hbm [resolvable:$true] %s262
          %s264 = sshll.u32 [#allocation10], 4
          %s265 = int_to_ptr.vmem [resolvable:$true] %s264
          %270 = dma.hbm_to_vmem [thread:$0]  %s263, 4096, %s265, [#allocation9], 256, 256, 16
        $region32: #{tpu_custom_call.1} parent=11 // pred_fallthru
          _
        // Predicated region
        $region33: #{tpu_custom_call.1} parent=11 // pred_check
          %p271 = pneg %p173
        $region34: #{tpu_custom_call.1} parent=11 // pred_check_branch
          %273 = sbr.rel (%p271) target = $region36
        $region35: #{tpu_custom_call.1} parent=11 // pred_region
          _
        $region36: #{tpu_custom_call.1} parent=11 // pred_fallthru
          _
      $region12: #{tpu_custom_call.1} parent=5 // pred_fallthru
        _
      %p274 = scmp.lt.s32.totalorder %s21, 2
      // Predicated region
      $region37: #{tpu_custom_call.1} parent=5 // pred_check
        %p275 = pneg %p274
      $region38: #{tpu_custom_call.1} parent=5 // pred_check_branch
        %277 = sbr.rel (%p275) target = $region40
      $region39: #{tpu_custom_call.1} parent=5 // pred_region
        // Predicated region
        $region41: #{tpu_custom_call.1} parent=39 // pred_check
          %p278 = pneg %p41
        $region42: #{tpu_custom_call.1} parent=39 // pred_check_branch
          %280 = sbr.rel (%p278) target = $region44
        $region43: #{tpu_custom_call.1} parent=39 // pred_region
          %s281 = sand.u32 %s31, 1
          %s282 = scalar_lea.sflag [#allocation3], %s281
          %s283 = sand.u32 %s31, 1
          %s284 = smul.addr %s283, 8
          %s285 = scalar_lea.vmem [#allocation2], %s284
          %287 = vsyncadd %s282, 0
          %s288 = smul.addr %s21, 8
          %s289 = scalar_lea.hbm %s0, %s288
          %s291 = sshll.u32 %s289, 4
          %s292 = int_to_ptr.hbm [resolvable:$true] %s291
          %s293 = sshll.u32 %s285, 4
          %s294 = int_to_ptr.vmem [resolvable:$true] %s293
          %296 = dma.hbm_to_vmem [thread:$0]  %s292, 128, %s294, %s282
        $region44: #{tpu_custom_call.1} parent=39 // pred_fallthru
          _
      $region40: #{tpu_custom_call.1} parent=5 // pred_fallthru
        _
      %p297 = scmp.le.s32.totalorder 1, %s21
      %p298 = scmp.lt.s32.totalorder %s21, 3
      %p299 = pnand %p297, %p298
      %p300 = pneg %p299
      // Predicated region
      $region45: #{tpu_custom_call.1} parent=5 // pred_check
        _
      $region46: #{tpu_custom_call.1} parent=5 // pred_check_branch
        %302 = sbr.rel (%p299) target = $region48
      $region47: #{tpu_custom_call.1} parent=5 // pred_region
        %s303 = ssub.s32 %s21, 1
        %s304 = sand.u32 %s34, 1
        %s305 = scalar_lea.sflag [#allocation3], %s304
        %s306 = sand.u32 %s34, 1
        %s307 = smul.addr %s306, 8
        %s308 = scalar_lea.vmem [#allocation2], %s307
        // Predicated region
        $region49: #{tpu_custom_call.1} parent=47 // pred_check
          %p309 = pneg %p47
        $region50: #{tpu_custom_call.1} parent=47 // pred_check_branch
          %311 = sbr.rel (%p309) target = $region52
        $region51: #{tpu_custom_call.1} parent=47 // pred_region
          %313 = dma.done %s305, 128
        $region52: #{tpu_custom_call.1} parent=47 // pred_fallthru
          _
        // Predicated region
        $region53: #{tpu_custom_call.1} parent=47 // pred_check
          %p314 = pneg %p68
        $region54: #{tpu_custom_call.1} parent=47 // pred_check_branch
          %316 = sbr.rel (%p314) target = $region56
        $region55: #{tpu_custom_call.1} parent=47 // pred_region
          %318 = dma.done [#allocation6], 2048
        $region56: #{tpu_custom_call.1} parent=47 // pred_fallthru
          _
        // Predicated region
        $region57: #{tpu_custom_call.1} parent=47 // pred_check
          %p319 = pneg %p110
        $region58: #{tpu_custom_call.1} parent=47 // pred_check_branch
          %321 = sbr.rel (%p319) target = $region60
        $region59: #{tpu_custom_call.1} parent=47 // pred_region
          %323 = dma.done [#allocation6], 2048
        $region60: #{tpu_custom_call.1} parent=47 // pred_fallthru
          _
        // Predicated region
        $region61: #{tpu_custom_call.1} parent=47 // pred_check
          %p324 = pneg %p131
        $region62: #{tpu_custom_call.1} parent=47 // pred_check_branch
          %326 = sbr.rel (%p324) target = $region64
        $region63: #{tpu_custom_call.1} parent=47 // pred_region
          %328 = dma.done [#allocation9], 16
        $region64: #{tpu_custom_call.1} parent=47 // pred_fallthru
          _
        // Predicated region
        $region65: #{tpu_custom_call.1} parent=47 // pred_check
          %p329 = pneg %p152
        $region66: #{tpu_custom_call.1} parent=47 // pred_check_branch
          %331 = sbr.rel (%p329) target = $region68
        $region67: #{tpu_custom_call.1} parent=47 // pred_region
          %333 = dma.done [#allocation9], 4096
        $region68: #{tpu_custom_call.1} parent=47 // pred_fallthru
          _
        %s334 = sand.u32 %s34, 1
        %s335 = scalar_lea.sflag [#allocation3], %s334
        %s336 = sand.u32 %s34, 1
        %s337 = smul.addr %s336, 8
        %s338 = scalar_lea.vmem [#allocation2], %s337
        %p339 = pneg %p47
        %p340 = pneg %p44
        %p341 = pneg %p68
        %p342 = pneg %p65
        %p343 = pneg %p89
        %p344 = pneg %p86
        %p345 = pneg %p110
        %p346 = pneg %p107
        %p347 = pneg %p131
        %p348 = pneg %p128
        %p349 = pneg %p152
        %p350 = pneg %p149
        %p351 = pneg %p173
        %p352 = pneg %p170
        %p353 = pneg %p199
        %p354 = pneg %p196
        %s355 = sand.u32 %s186, 1
        %s356 = scalar_lea.sflag [#allocation4], %s355
        %s357 = sand.u32 %s186, 1
        %s358 = smul.addr %s357, 16
        %s359 = scalar_lea.vmem [#allocation11], %s358
        %v360 = vld [vmem:[%s308] sm:$0xff]
        %v361 = vld [vmem:[#allocation5] sm:$0xff]
        %v362 = vld [vmem:[#allocation5 + $0x8] sm:$0xff]
        %v363 = vld [vmem:[#allocation5 + $0x10] sm:$0xff]
        %v364 = vld [vmem:[#allocation5 + $0x18] sm:$0xff]
        %v365 = vld [vmem:[#allocation5 + $0x20] sm:$0xff]
        %v366 = vld [vmem:[#allocation5 + $0x28] sm:$0xff]
        %v367 = vld [vmem:[#allocation5 + $0x30] sm:$0xff]
        %v368 = vld [vmem:[#allocation5 + $0x38] sm:$0xff]
        %v369 = vld [vmem:[#allocation5 + $0x40] sm:$0xff]
        %v370 = vld [vmem:[#allocation5 + $0x48] sm:$0xff]
        %v371 = vld [vmem:[#allocation5 + $0x50] sm:$0xff]
        %v372 = vld [vmem:[#allocation5 + $0x58] sm:$0xff]
        %v373 = vld [vmem:[#allocation5 + $0x60] sm:$0xff]
        %v374 = vld [vmem:[#allocation5 + $0x68] sm:$0xff]
        %v375 = vld [vmem:[#allocation5 + $0x70] sm:$0xff]
        %v376 = vld [vmem:[#allocation5 + $0x78] sm:$0xff]
        %v377 = vld [vmem:[%s2] sm:$0x1]
        %v379 = vperm.slane %v377, 0
        %381 = vmatpush.msra.mxu0 %v376
        %382 = vmatpush.msra.mxu0 %v375
        %383 = vmatpush.msra.mxu0 %v374
        %384 = vmatpush.msra.mxu0 %v373
        %385 = vmatpush.msra.mxu0 %v372
        %386 = vmatpush.msra.mxu0 %v371
        %387 = vmatpush.msra.mxu0 %v370
        %388 = vmatpush.msra.mxu0 %v369
        %389 = vmatpush.msra.mxu0 %v368
        %390 = vmatpush.msra.mxu0 %v367
        %391 = vmatpush.msra.mxu0 %v366
        %392 = vmatpush.msra.mxu0 %v365
        %393 = vmatpush.msra.mxu0 %v364
        %394 = vmatpush.msra.mxu0 %v363
        %395 = vmatpush.msra.mxu0 %v362
        %396 = vmatpush.msra.mxu0 %v361
        %397 = vmatmul.f32.gmra.mxu0 %v360
        %v398 = vpop.f32.mrf.mxu0
        %v399 = vadd.f32 %v379, %v398
        %400 = vdwg.mxu0
        %v401 = vmax.f32 %v399, 0.0
        %v402 = vld [vmem:[#allocation7] sm:$0xff]
        %v403 = vld [vmem:[#allocation7 + $0x8] sm:$0xff]
        %v404 = vld [vmem:[#allocation7 + $0x10] sm:$0xff]
        %v405 = vld [vmem:[#allocation7 + $0x18] sm:$0xff]
        %v406 = vld [vmem:[#allocation7 + $0x20] sm:$0xff]
        %v407 = vld [vmem:[#allocation7 + $0x28] sm:$0xff]
        %v408 = vld [vmem:[#allocation7 + $0x30] sm:$0xff]
        %v409 = vld [vmem:[#allocation7 + $0x38] sm:$0xff]
        %v410 = vld [vmem:[#allocation7 + $0x40] sm:$0xff]
        %v411 = vld [vmem:[#allocation7 + $0x48] sm:$0xff]
        %v412 = vld [vmem:[#allocation7 + $0x50] sm:$0xff]
        %v413 = vld [vmem:[#allocation7 + $0x58] sm:$0xff]
        %v414 = vld [vmem:[#allocation7 + $0x60] sm:$0xff]
        %v415 = vld [vmem:[#allocation7 + $0x68] sm:$0xff]
        %v416 = vld [vmem:[#allocation7 + $0x70] sm:$0xff]
        %v417 = vld [vmem:[#allocation7 + $0x78] sm:$0xff]
        %v418 = vld [vmem:[#allocation8] sm:$0x1]
        %v420 = vperm.slane %v418, 0
        %422 = vmatpush.msra.mxu0 %v417
        %423 = vmatpush.msra.mxu0 %v416
        %424 = vmatpush.msra.mxu0 %v415
        %425 = vmatpush.msra.mxu0 %v414
        %426 = vmatpush.msra.mxu0 %v413
        %427 = vmatpush.msra.mxu0 %v412
        %428 = vmatpush.msra.mxu0 %v411
        %429 = vmatpush.msra.mxu0 %v410
        %430 = vmatpush.msra.mxu0 %v409
        %431 = vmatpush.msra.mxu0 %v408
        %432 = vmatpush.msra.mxu0 %v407
        %433 = vmatpush.msra.mxu0 %v406
        %434 = vmatpush.msra.mxu0 %v405
        %435 = vmatpush.msra.mxu0 %v404
        %436 = vmatpush.msra.mxu0 %v403
        %437 = vmatpush.msra.mxu0 %v402
        %438 = vmatmul.f32.gmra.mxu0 %v401
        %v439 = vpop.f32.mrf.mxu0
        %v440 = vadd.f32 %v420, %v439
        %441 = vdwg.mxu0
        %v442 = vmax.f32 %v440, 0.0
        %v443 = vld [vmem:[#allocation10] sm:$0xff]
        %v444 = vld [vmem:[#allocation10 + $0x8] sm:$0xff]
        %v445 = vld [vmem:[#allocation10 + $0x10] sm:$0xff]
        %v446 = vld [vmem:[#allocation10 + $0x18] sm:$0xff]
        %v447 = vld [vmem:[#allocation10 + $0x20] sm:$0xff]
        %v448 = vld [vmem:[#allocation10 + $0x28] sm:$0xff]
        %v449 = vld [vmem:[#allocation10 + $0x30] sm:$0xff]
        %v450 = vld [vmem:[#allocation10 + $0x38] sm:$0xff]
        %v451 = vld [vmem:[#allocation10 + $0x40] sm:$0xff]
        %v452 = vld [vmem:[#allocation10 + $0x48] sm:$0xff]
        %v453 = vld [vmem:[#allocation10 + $0x50] sm:$0xff]
        %v454 = vld [vmem:[#allocation10 + $0x58] sm:$0xff]
        %v455 = vld [vmem:[#allocation10 + $0x60] sm:$0xff]
        %v456 = vld [vmem:[#allocation10 + $0x68] sm:$0xff]
        %v457 = vld [vmem:[#allocation10 + $0x70] sm:$0xff]
        %v458 = vld [vmem:[#allocation10 + $0x78] sm:$0xff]
        %v459 = vld [vmem:[#allocation10 + $0x80] sm:$0xff]
        %v460 = vld [vmem:[#allocation10 + $0x88] sm:$0xff]
        %v461 = vld [vmem:[#allocation10 + $0x90] sm:$0xff]
        %v462 = vld [vmem:[#allocation10 + $0x98] sm:$0xff]
        %v463 = vld [vmem:[#allocation10 + $0xa0] sm:$0xff]
        %v464 = vld [vmem:[#allocation10 + $0xa8] sm:$0xff]
        %v465 = vld [vmem:[#allocation10 + $0xb0] sm:$0xff]
        %v466 = vld [vmem:[#allocation10 + $0xb8] sm:$0xff]
        %v467 = vld [vmem:[#allocation10 + $0xc0] sm:$0xff]
        %v468 = vld [vmem:[#allocation10 + $0xc8] sm:$0xff]
        %v469 = vld [vmem:[#allocation10 + $0xd0] sm:$0xff]
        %v470 = vld [vmem:[#allocation10 + $0xd8] sm:$0xff]
        %v471 = vld [vmem:[#allocation10 + $0xe0] sm:$0xff]
        %v472 = vld [vmem:[#allocation10 + $0xe8] sm:$0xff]
        %v473 = vld [vmem:[#allocation10 + $0xf0] sm:$0xff]
        %v474 = vld [vmem:[#allocation10 + $0xf8] sm:$0xff]
        %v475 = vld [vmem:[%s6] sm:$0x3]
        %v477 = vperm.slane %v475, 0
        %v478 = vperm.slane %v475, 1
        %481 = vmatpush.msra.mxu0 %v473
        %482 = vmatpush.msra.mxu0 %v471
        %483 = vmatpush.msra.mxu0 %v469
        %484 = vmatpush.msra.mxu0 %v467
        %485 = vmatpush.msra.mxu0 %v465
        %486 = vmatpush.msra.mxu0 %v463
        %487 = vmatpush.msra.mxu0 %v461
        %488 = vmatpush.msra.mxu0 %v459
        %489 = vmatpush.msra.mxu0 %v457
        %490 = vmatpush.msra.mxu0 %v455
        %491 = vmatpush.msra.mxu0 %v453
        %492 = vmatpush.msra.mxu0 %v451
        %493 = vmatpush.msra.mxu0 %v449
        %494 = vmatpush.msra.mxu0 %v447
        %495 = vmatpush.msra.mxu0 %v445
        %496 = vmatpush.msra.mxu0 %v443
        %497 = vmatmul.f32.gmra.mxu0 %v442
        %v498 = vpop.f32.mrf.mxu0
        %v499 = vadd.f32 %v477, %v498
        %500 = vdwg.mxu0
        %501 = vmatpush.msra.mxu0 %v474
        %502 = vmatpush.msra.mxu0 %v472
        %503 = vmatpush.msra.mxu0 %v470
        %504 = vmatpush.msra.mxu0 %v468
        %505 = vmatpush.msra.mxu0 %v466
        %506 = vmatpush.msra.mxu0 %v464
        %507 = vmatpush.msra.mxu0 %v462
        %508 = vmatpush.msra.mxu0 %v460
        %509 = vmatpush.msra.mxu0 %v458
        %510 = vmatpush.msra.mxu0 %v456
        %511 = vmatpush.msra.mxu0 %v454
        %512 = vmatpush.msra.mxu0 %v452
        %513 = vmatpush.msra.mxu0 %v450
        %514 = vmatpush.msra.mxu0 %v448
        %515 = vmatpush.msra.mxu0 %v446
        %516 = vmatpush.msra.mxu0 %v444
        %517 = vmatmul.f32.gmra.mxu0 %v442
        %v518 = vpop.f32.mrf.mxu0
        %v519 = vadd.f32 %v478, %v518
        %520 = vdwg.mxu0
        %521 = vst [vmem:[%s359] sm:$0xff] %v499
        %522 = vst [vmem:[%s359 + $0x8] sm:$0xff] %v519
        %s523 = sand.u32 %s186, 1
        %s524 = scalar_lea.sflag [#allocation4], %s523
        %s525 = sand.u32 %s186, 1
        %s526 = smul.addr %s525, 16
        %s527 = scalar_lea.vmem [#allocation11], %s526
        // Predicated region
        $region69: #{tpu_custom_call.1} parent=47 // pred_check
          %p528 = pneg %p196
        $region70: #{tpu_custom_call.1} parent=47 // pred_check_branch
          %530 = sbr.rel (%p528) target = $region72
        $region71: #{tpu_custom_call.1} parent=47 // pred_region
          %532 = vsyncadd %s524, 0
          %s533 = smul.addr %s26, 2
          %s534 = smul.addr %s533, 8
          %s535 = scalar_lea.hbm %s7, %s534
          %s537 = sshll.u32 %s527, 4
          %s538 = int_to_ptr.vmem [resolvable:$true] %s537
          %s539 = sshll.u32 %s535, 4
          %s540 = int_to_ptr.hbm [resolvable:$true] %s539
          %542 = dma.vmem_to_hbm [thread:$0]  %s538, 256, %s540, %s524
        $region72: #{tpu_custom_call.1} parent=47 // pred_fallthru
          _
      $region48: #{tpu_custom_call.1} parent=5 // pred_fallthru
        _
      %p543 = scmp.le.s32.totalorder 2, %s21
      // Predicated region
      $region73: #{tpu_custom_call.1} parent=5 // pred_check
        %p544 = pneg %p543
      $region74: #{tpu_custom_call.1} parent=5 // pred_check_branch
        %546 = sbr.rel (%p544) target = $region76
      $region75: #{tpu_custom_call.1} parent=5 // pred_region
        %s547 = ssub.s32 %s21, 2
        // Predicated region
        $region77: #{tpu_custom_call.1} parent=75 // pred_check
          %p548 = pneg %p202
        $region78: #{tpu_custom_call.1} parent=75 // pred_check_branch
          %550 = sbr.rel (%p548) target = $region80
        $region79: #{tpu_custom_call.1} parent=75 // pred_region
          %s551 = sand.u32 %s187, 1
          %s552 = scalar_lea.sflag [#allocation4], %s551
          %s553 = sand.u32 %s187, 1
          %s554 = smul.addr %s553, 16
          %s555 = scalar_lea.vmem [#allocation11], %s554
          %557 = dma.done %s552, 256
        $region80: #{tpu_custom_call.1} parent=75 // pred_fallthru
          _
      $region76: #{tpu_custom_call.1} parent=5 // pred_fallthru
        _
    $region6: #{tpu_custom_call.1} parent=1 // loop_footer
      %s25 = sadd.s32 1, %s21
    $region7: #{tpu_custom_call.1} parent=1 // loop_footer_branch
      %20 = sbr.rel target = $region3
    $region8: #{tpu_custom_call.1} parent=1 // loop_exit
      _
    %558 = vsyncpa [#allocation3], 1
    %s559 = scalar_lea.sflag [#allocation3], 1
    %560 = vsyncpa %s559, 1
    %561 = vsyncpa [#allocation6], 1
    %562 = vsyncpa [#allocation9], 1
    %563 = vsyncpa [#allocation4], 1
    %s564 = scalar_lea.sflag [#allocation4], 1
    %565 = vsyncpa %s564, 1

</llo_original>
